<compile_context>
chip_gen: v5e
topology: v5e:2x2
jax: 0.10.0
libtpu: 0.0.40
codegen_flags: <defaults>
</compile_context>

<pallas_src>
import math

import jax
import jax.numpy as jnp
from jax.experimental import pallas as pl
from jax.experimental.pallas import tpu as pltpu


def _round_up(n, m):
    return ((n + m - 1) // m) * m


# ---------------------------------------------------------------------------
# Kernel
# ---------------------------------------------------------------------------
def vae_kernel(
    x_ref,          # [TB, Dp]     bf16  input tile
    eps_ref,        # [TB, Lp]     bf16  N(0,1) noise for rsample()
    w_enc_ref,      # [Dp, Lp]     bf16  (resident)
    b_enc_ref,      # [1, Lp]      f32   (resident)
    w_mv_ref,       # [Lp, 2*Lp]   bf16  fused fc_mu | fc_var (resident)
    b_mv_ref,       # [1, 2*Lp]    f32   (resident)
    w_dec_ref,      # [Lp, Dp]     bf16  (resident)
    b_dec_ref,      # [1, Dp]      f32   (resident)
    dec_out_ref,    # [TB, Dp]     bf16  decoded
    muvar_out_ref,  # [TB, 2*Lp]   f32   mean | log_var
):
    lp = w_mv_ref.shape[0]

    # ---- encoder stand-in: Linear + tanh ----
    enc = jnp.dot(x_ref[...], w_enc_ref[...], preferred_element_type=jnp.float32)
    enc = jnp.tanh(enc + b_enc_ref[...])

    # ---- fused fc_mu / fc_var: one MXU pass over [Lp, 2*Lp] ----
    mv = jnp.dot(enc.astype(w_mv_ref.dtype), w_mv_ref[...],
                 preferred_element_type=jnp.float32) + b_mv_ref[...]
    mean = mv[:, :lp]
    log_var = mv[:, lp:]

    # ---- reparameterization: Normal(mean, exp(log_var/2)).rsample() ----
    std = jnp.exp(log_var * 0.5)
    sampled = mean + std * eps_ref[...].astype(jnp.float32)

    # ---- decoder stand-in: Linear + sigmoid ----
    dec = jnp.dot(sampled.astype(w_dec_ref.dtype), w_dec_ref[...],
                  preferred_element_type=jnp.float32) + b_dec_ref[...]
    # sigmoid(x) = 0.5*(tanh(0.5*x)+1): a single EUP transcendental.
    dec_out_ref[...] = (0.5 * (jnp.tanh(0.5 * dec) + 1.0)).astype(dec_out_ref.dtype)
    muvar_out_ref[...] = mv.astype(muvar_out_ref.dtype)


# ---------------------------------------------------------------------------
# One-time parameter preparation (call once, cache the result)
# ---------------------------------------------------------------------------
def prepare_params(params, d_in, latent):
    """Pad weights to lane-dense (128-multiple) dims, cast to bf16, fuse
    fc_mu|fc_var. This rewrites every weight through HBM, so it must run
    once per parameter update -- not per forward call."""
    Dp = max(_round_up(d_in, 128), 128)
    Lp = max(_round_up(latent, 128), 128)
    bf16, f32 = jnp.bfloat16, jnp.float32

    w_enc = jnp.zeros((Dp, Lp), bf16).at[:d_in, :latent].set(params["w_enc"].astype(bf16))
    b_enc = jnp.zeros((1, Lp), f32).at[:, :latent].set(params["b_enc"].astype(f32))

    w_mv = jnp.zeros((Lp, 2 * Lp), bf16)
    w_mv = w_mv.at[:latent, :latent].set(params["w_mu"].astype(bf16))
    w_mv = w_mv.at[:latent, Lp:Lp + latent].set(params["w_var"].astype(bf16))
    b_mv = jnp.zeros((1, 2 * Lp), f32)
    b_mv = b_mv.at[:, :latent].set(params["b_mu"].astype(f32))
    b_mv = b_mv.at[:, Lp:Lp + latent].set(params["b_var"].astype(f32))

    w_dec = jnp.zeros((Lp, Dp), bf16).at[:latent, :d_in].set(params["w_dec"].astype(bf16))
    b_dec = jnp.zeros((1, Dp), f32).at[:, :d_in].set(params["b_dec"].astype(f32))

    prep = {
        "d_in": d_in, "latent": latent, "Dp": Dp, "Lp": Lp,
        "w_enc": w_enc, "b_enc": b_enc,
        "w_mv": w_mv, "b_mv": b_mv,
        "w_dec": w_dec, "b_dec": b_dec,
    }
    return jax.block_until_ready(prep)


# ---------------------------------------------------------------------------
# Forward
# ---------------------------------------------------------------------------
def vae_forward(x, eps, prep, *, tb=None):
    """Fused VAE forward. Returns (decoded[bf16], mean[f32], log_var[f32]) at
    logical shapes. `prep` is the cached output of prepare_params()."""
    B, D = x.shape
    L = eps.shape[1]
    Dp, Lp = prep["Dp"], prep["Lp"]
    bf16, f32 = jnp.bfloat16, jnp.float32

    if tb is None:
        # Small batches: one grid step covering the whole (sublane-aligned)
        # batch.  Large batches: 256-row tiles -> full 256x256 MXU passes on
        # v6e/v7x and an even number of tiles for the 2-TC split on v7x.
        tb = _round_up(B, 8) if B <= 256 else 256
    Bp = _round_up(B, tb)

    # --- pad + cast activations (zero padding keeps semantics exact) ---
    xp = jnp.zeros((Bp, Dp), bf16).at[:B, :D].set(x.astype(bf16))
    epsp = jnp.zeros((Bp, Lp), bf16).at[:B, :L].set(eps.astype(bf16))

    in_arrays = (xp, epsp, prep["w_enc"], prep["b_enc"], prep["w_mv"],
                 prep["b_mv"], prep["w_dec"], prep["b_dec"])

    # Activations/outputs stream over the batch (double-buffered by default);
    # weights/biases are resident and single-buffered (never re-DMA'd).
    def batched(shape):
        return pl.BlockSpec(shape, lambda i: (i, 0))

    def resident(shape):
        return pl.BlockSpec(shape, lambda i: (0, 0), pipeline_mode=pl.Buffered(1))

    in_specs = [
        batched((tb, Dp)),          # x
        batched((tb, Lp)),          # eps
        resident((Dp, Lp)),         # w_enc
        resident((1, Lp)),          # b_enc
        resident((Lp, 2 * Lp)),     # w_mv
        resident((1, 2 * Lp)),      # b_mv
        resident((Lp, Dp)),         # w_dec
        resident((1, Dp)),          # b_dec
    ]

    out_shape = (
        jax.ShapeDtypeStruct((Bp, Dp), bf16),      # decoded (padded, bf16)
        jax.ShapeDtypeStruct((Bp, 2 * Lp), f32),   # mean | log_var (padded)
    )
    out_specs = (
        batched((tb, Dp)),
        batched((tb, 2 * Lp)),
    )

    # Explicit VMEM budget: single-buffered weights + double-buffered
    # activation/output tiles + headroom, capped at the v7x physical 64 MiB.
    weight_bytes = (
        2 * (Dp * Lp + Lp * 2 * Lp + Lp * Dp)      # bf16 weights
        + 4 * (Lp + 2 * Lp + Dp)                   # f32 biases
    )
    act_bytes = tb * (2 * Dp + 2 * Lp) + tb * (2 * Dp + 4 * 2 * Lp)
    vmem_limit = min(max(weight_bytes + 4 * act_bytes + (8 << 20), 32 << 20), 64 << 20)

    # Advisory cost estimate so XLA schedules the surrounding graph sensibly.
    flops = 2 * Bp * (Dp * Lp + Lp * 2 * Lp + Lp * Dp)
    transcendentals = Bp * (Lp + Lp + Dp)  # tanh + exp + tanh(sigmoid)
    bytes_accessed = (
        sum(a.size * a.dtype.itemsize for a in in_arrays)
        + sum(math.prod(s.shape) * s.dtype.itemsize for s in out_shape)
    )

    dec_p, mv_p = pl.pallas_call(
        vae_kernel,
        out_shape=out_shape,
        grid_spec=pltpu.PrefetchScalarGridSpec(
            num_scalar_prefetch=0,
            grid=(Bp // tb,),
            in_specs=in_specs,
            out_specs=out_specs,
        ),
        compiler_params=pltpu.CompilerParams(
            dimension_semantics=("parallel",),
            vmem_limit_bytes=int(vmem_limit),
        ),
        cost_estimate=pl.CostEstimate(
            flops=flops,
            transcendentals=transcendentals,
            bytes_accessed=bytes_accessed,
        ),
    )(*in_arrays)

    decoded = dec_p[:B, :D]                # bf16
    mean = mv_p[:B, :L]                    # f32
    log_var = mv_p[:B, Lp:Lp + L]          # f32
    return decoded, mean, log_var


def init_params(key, d_in, latent):
    ks = jax.random.split(key, 5)
    scale = 0.1
    return {
        "w_enc": scale * jax.random.normal(ks[0], (d_in, latent), jnp.float32),
        "b_enc": jnp.zeros((1, latent), jnp.float32),
        "w_mu": scale * jax.random.normal(ks[1], (latent, latent), jnp.float32),
        "b_mu": jnp.zeros((1, latent), jnp.float32),
        "w_var": scale * jax.random.normal(ks[2], (latent, latent), jnp.float32),
        "b_var": jnp.zeros((1, latent), jnp.float32),
        "w_dec": scale * jax.random.normal(ks[3], (latent, d_in), jnp.float32),
        "b_dec": jnp.zeros((1, d_in), jnp.float32),
    }


if __name__ == "__main__":
    B, D_IN, LATENT = 32, 32, 12

    key = jax.random.PRNGKey(0)
    k_x, k_eps, k_p = jax.random.split(key, 3)

    x = jax.random.normal(k_x, (B, D_IN), jnp.float32)
    eps = jax.random.normal(k_eps, (B, LATENT), jnp.float32)  # rsample noise
    params = init_params(k_p, D_IN, LATENT)

    prep = prepare_params(params, D_IN, LATENT)   # one-time, cached
    decoded, mean, log_var = vae_forward(x, eps, prep)
    jax.block_until_ready((decoded, mean, log_var))

    # Pure-JAX reference (same bf16 matmul operands + bf16 noise, f32
    # accumulation/epilogue; decoded is compared at bf16 precision).
    bf16 = jnp.bfloat16
    eps_b = eps.astype(bf16).astype(jnp.float32)
    enc_ref = jnp.tanh(
        jnp.dot(x.astype(bf16), params["w_enc"].astype(bf16),
                preferred_element_type=jnp.float32) + params["b_enc"])
    mean_ref = jnp.dot(enc_ref.astype(bf16), params["w_mu"].astype(bf16),
                       preferred_element_type=jnp.float32) + params["b_mu"]
    logvar_ref = jnp.dot(enc_ref.astype(bf16), params["w_var"].astype(bf16),
                         preferred_element_type=jnp.float32) + params["b_var"]
    sampled_ref = mean_ref + jnp.exp(logvar_ref * 0.5) * eps_b
    dec_ref = jax.nn.sigmoid(
        jnp.dot(sampled_ref.astype(bf16), params["w_dec"].astype(bf16),
                preferred_element_type=jnp.float32) + params["b_dec"])

    assert decoded.shape == (B, D_IN)
    assert mean.shape == (B, LATENT) and log_var.shape == (B, LATENT)
    assert jnp.allclose(decoded.astype(jnp.float32), dec_ref, atol=2e-2), "decoded mismatch"
    assert jnp.allclose(mean, mean_ref, atol=1e-2), "mean mismatch"
    assert jnp.allclose(log_var, logvar_ref, atol=1e-2), "log_var mismatch"

    print("KERNEL_OK")
</pallas_src>

<mosaic_0001>
module attributes {stable_mosaic.version = 11 : i64} {
  func.func @vae_kernel(%arg0: i32, %arg1: memref<32x128xbf16, #tpu.memory_space<vmem>>, %arg2: memref<32x128xbf16, #tpu.memory_space<vmem>>, %arg3: memref<128x128xbf16, #tpu.memory_space<vmem>>, %arg4: memref<1x128xf32, #tpu.memory_space<vmem>>, %arg5: memref<128x256xbf16, #tpu.memory_space<vmem>>, %arg6: memref<1x256xf32, #tpu.memory_space<vmem>>, %arg7: memref<128x128xbf16, #tpu.memory_space<vmem>>, %arg8: memref<1x128xf32, #tpu.memory_space<vmem>>, %arg9: memref<32x128xbf16, #tpu.memory_space<vmem>>, %arg10: memref<32x256xf32, #tpu.memory_space<vmem>>) attributes {dimension_semantics = [#tpu.dimension_semantics<parallel>], iteration_bounds = array<i64: 1>, scalar_prefetch = 0 : i64, scratch_operands = 0 : i64, tpu.core_type = #tpu.core_type<tc>, window_params = [{transform_indices = @transform_0, window_bounds = array<i64: 32, 128>}, {transform_indices = @transform_1, window_bounds = array<i64: 32, 128>}, {pipeline_mode = #tpu.pipeline_mode<synchronous>, transform_indices = @transform_2, window_bounds = array<i64: 128, 128>}, {pipeline_mode = #tpu.pipeline_mode<synchronous>, transform_indices = @transform_3, window_bounds = array<i64: 1, 128>}, {pipeline_mode = #tpu.pipeline_mode<synchronous>, transform_indices = @transform_4, window_bounds = array<i64: 128, 256>}, {pipeline_mode = #tpu.pipeline_mode<synchronous>, transform_indices = @transform_5, window_bounds = array<i64: 1, 256>}, {pipeline_mode = #tpu.pipeline_mode<synchronous>, transform_indices = @transform_6, window_bounds = array<i64: 128, 128>}, {pipeline_mode = #tpu.pipeline_mode<synchronous>, transform_indices = @transform_7, window_bounds = array<i64: 1, 128>}, {transform_indices = @transform_8, window_bounds = array<i64: 32, 128>}, {transform_indices = @transform_9, window_bounds = array<i64: 32, 256>}]} {
    %c0 = arith.constant 0 : index
    %c0_0 = arith.constant 0 : index
    %0 = vector.load %arg1[%c0, %c0_0] : memref<32x128xbf16, #tpu.memory_space<vmem>>, vector<32x128xbf16>
    %c0_1 = arith.constant 0 : index
    %c0_2 = arith.constant 0 : index
    %1 = vector.load %arg3[%c0_1, %c0_2] : memref<128x128xbf16, #tpu.memory_space<vmem>>, vector<128x128xbf16>
    %cst = arith.constant dense<0.000000e+00> : vector<32x128xf32>
    %2 = tpu.matmul %0, %1, %cst {dimension_numbers = #tpu.dot_dimension_numbers<[1], [0], [0], [1], [0, 0, 1, 1], [], []>} : vector<32x128xbf16>, vector<128x128xbf16>, vector<32x128xf32> -> vector<32x128xf32>
    %c0_3 = arith.constant 0 : index
    %c0_4 = arith.constant 0 : index
    %3 = vector.load %arg4[%c0_3, %c0_4] : memref<1x128xf32, #tpu.memory_space<vmem>>, vector<1x128xf32>
    %4 = vector.broadcast %3 : vector<1x128xf32> to vector<32x128xf32>
    %5 = arith.addf %2, %4 : vector<32x128xf32>
    %6 = math.tanh %5 : vector<32x128xf32>
    %7 = arith.truncf %6 : vector<32x128xf32> to vector<32x128xbf16>
    %c0_5 = arith.constant 0 : index
    %c0_6 = arith.constant 0 : index
    %8 = vector.load %arg5[%c0_5, %c0_6] : memref<128x256xbf16, #tpu.memory_space<vmem>>, vector<128x256xbf16>
    %cst_7 = arith.constant dense<0.000000e+00> : vector<32x256xf32>
    %9 = tpu.matmul %7, %8, %cst_7 {dimension_numbers = #tpu.dot_dimension_numbers<[1], [0], [0], [1], [0, 0, 1, 1], [], []>} : vector<32x128xbf16>, vector<128x256xbf16>, vector<32x256xf32> -> vector<32x256xf32>
    %c0_8 = arith.constant 0 : index
    %c0_9 = arith.constant 0 : index
    %10 = vector.load %arg6[%c0_8, %c0_9] : memref<1x256xf32, #tpu.memory_space<vmem>>, vector<1x256xf32>
    %11 = vector.broadcast %10 : vector<1x256xf32> to vector<32x256xf32>
    %12 = arith.addf %9, %11 : vector<32x256xf32>
    %13 = vector.extract_strided_slice %12 {offsets = [0, 0], sizes = [32, 128], strides = [1, 1]} : vector<32x256xf32> to vector<32x128xf32>
    %14 = vector.extract_strided_slice %12 {offsets = [0, 128], sizes = [32, 128], strides = [1, 1]} : vector<32x256xf32> to vector<32x128xf32>
    %cst_10 = arith.constant 5.000000e-01 : f32
    %15 = vector.broadcast %cst_10 : f32 to vector<32x128xf32>
    %16 = arith.mulf %14, %15 : vector<32x128xf32>
    %17 = math.exp %16 : vector<32x128xf32>
    %c0_11 = arith.constant 0 : index
    %c0_12 = arith.constant 0 : index
    %18 = vector.load %arg2[%c0_11, %c0_12] : memref<32x128xbf16, #tpu.memory_space<vmem>>, vector<32x128xbf16>
    %19 = arith.extf %18 : vector<32x128xbf16> to vector<32x128xf32>
    %20 = arith.mulf %17, %19 : vector<32x128xf32>
    %21 = arith.addf %13, %20 : vector<32x128xf32>
    %22 = arith.truncf %21 : vector<32x128xf32> to vector<32x128xbf16>
    %c0_13 = arith.constant 0 : index
    %c0_14 = arith.constant 0 : index
    %23 = vector.load %arg7[%c0_13, %c0_14] : memref<128x128xbf16, #tpu.memory_space<vmem>>, vector<128x128xbf16>
    %cst_15 = arith.constant dense<0.000000e+00> : vector<32x128xf32>
    %24 = tpu.matmul %22, %23, %cst_15 {dimension_numbers = #tpu.dot_dimension_numbers<[1], [0], [0], [1], [0, 0, 1, 1], [], []>} : vector<32x128xbf16>, vector<128x128xbf16>, vector<32x128xf32> -> vector<32x128xf32>
    %c0_16 = arith.constant 0 : index
    %c0_17 = arith.constant 0 : index
    %25 = vector.load %arg8[%c0_16, %c0_17] : memref<1x128xf32, #tpu.memory_space<vmem>>, vector<1x128xf32>
    %26 = vector.broadcast %25 : vector<1x128xf32> to vector<32x128xf32>
    %27 = arith.addf %24, %26 : vector<32x128xf32>
    %cst_18 = arith.constant 5.000000e-01 : f32
    %28 = vector.broadcast %cst_18 : f32 to vector<32x128xf32>
    %29 = arith.mulf %28, %27 : vector<32x128xf32>
    %30 = math.tanh %29 : vector<32x128xf32>
    %cst_19 = arith.constant 1.000000e+00 : f32
    %31 = vector.broadcast %cst_19 : f32 to vector<32x128xf32>
    %32 = arith.addf %30, %31 : vector<32x128xf32>
    %cst_20 = arith.constant 5.000000e-01 : f32
    %33 = vector.broadcast %cst_20 : f32 to vector<32x128xf32>
    %34 = arith.mulf %33, %32 : vector<32x128xf32>
    %35 = arith.truncf %34 : vector<32x128xf32> to vector<32x128xbf16>
    %c0_21 = arith.constant 0 : index
    %c0_22 = arith.constant 0 : index
    %36 = vector.load %arg9[%c0_21, %c0_22] : memref<32x128xbf16, #tpu.memory_space<vmem>>, vector<32x128xbf16>
    tpu.vector_store %arg9[%c0_21, %c0_22], %35 {strides = array<i32>} : memref<32x128xbf16, #tpu.memory_space<vmem>>, vector<32x128xbf16>,
    %c0_23 = arith.constant 0 : index
    %c0_24 = arith.constant 0 : index
    %37 = vector.load %arg10[%c0_23, %c0_24] : memref<32x256xf32, #tpu.memory_space<vmem>>, vector<32x256xf32>
    tpu.vector_store %arg10[%c0_23, %c0_24], %12 {strides = array<i32>} : memref<32x256xf32, #tpu.memory_space<vmem>>, vector<32x256xf32>,
    return
  }
  func.func @transform_0(%arg0: i32) -> (i32, i32) {
    %c0_i32 = arith.constant 0 : i32
    %c0_i32_0 = arith.constant 0 : i32
    return %arg0, %c0_i32 : i32, i32
  }
  func.func @transform_1(%arg0: i32) -> (i32, i32) {
    %c0_i32 = arith.constant 0 : i32
    %c0_i32_0 = arith.constant 0 : i32
    return %arg0, %c0_i32 : i32, i32
  }
  func.func @transform_2(%arg0: i32) -> (i32, i32) {
    %c0_i32 = arith.constant 0 : i32
    %c0_i32_0 = arith.constant 0 : i32
    %c0_i32_1 = arith.constant 0 : i32
    return %c0_i32, %c0_i32_0 : i32, i32
  }
  func.func @transform_3(%arg0: i32) -> (i32, i32) {
    %c0_i32 = arith.constant 0 : i32
    %c0_i32_0 = arith.constant 0 : i32
    %c0_i32_1 = arith.constant 0 : i32
    return %c0_i32, %c0_i32_0 : i32, i32
  }
  func.func @transform_4(%arg0: i32) -> (i32, i32) {
    %c0_i32 = arith.constant 0 : i32
    %c0_i32_0 = arith.constant 0 : i32
    %c0_i32_1 = arith.constant 0 : i32
    return %c0_i32, %c0_i32_0 : i32, i32
  }
  func.func @transform_5(%arg0: i32) -> (i32, i32) {
    %c0_i32 = arith.constant 0 : i32
    %c0_i32_0 = arith.constant 0 : i32
    %c0_i32_1 = arith.constant 0 : i32
    return %c0_i32, %c0_i32_0 : i32, i32
  }
  func.func @transform_6(%arg0: i32) -> (i32, i32) {
    %c0_i32 = arith.constant 0 : i32
    %c0_i32_0 = arith.constant 0 : i32
    %c0_i32_1 = arith.constant 0 : i32
    return %c0_i32, %c0_i32_0 : i32, i32
  }
  func.func @transform_7(%arg0: i32) -> (i32, i32) {
    %c0_i32 = arith.constant 0 : i32
    %c0_i32_0 = arith.constant 0 : i32
    %c0_i32_1 = arith.constant 0 : i32
    return %c0_i32, %c0_i32_0 : i32, i32
  }
  func.func @transform_8(%arg0: i32) -> (i32, i32) {
    %c0_i32 = arith.constant 0 : i32
    %c0_i32_0 = arith.constant 0 : i32
    return %arg0, %c0_i32 : i32, i32
  }
  func.func @transform_9(%arg0: i32) -> (i32, i32) {
    %c0_i32 = arith.constant 0 : i32
    %c0_i32_0 = arith.constant 0 : i32
    return %arg0, %c0_i32 : i32, i32
  }
}

</mosaic_0001>

<llo_original>
// kernel: tpu_custom_call.1
$region0: #{tpu_custom_call.1}
  #allocation0 [shape = 'u32[]', space=smem, size = 0x4, offset = 0x4, fixed_abs, tag = 'smem constant byte address 0x4 - core index']
  #allocation1 [shape = 'u32[72,128]{1,0:T(1,128)}', space=vmem, size = 0x9000, scoped, tag = 'internal scratch']
  %s0 = inlined_call_operand.hbm [shape: bf16[32,128], index: 0, kind: input, shape index: {}]
  %s1 = inlined_call_operand.hbm [shape: bf16[32,128], index: 1, kind: input, shape index: {}]
  %s2 = inlined_call_operand.hbm [shape: bf16[128,128], index: 2, kind: input, shape index: {}]
  %s3 = inlined_call_operand.vmem [shape: f32[1,128], index: 3, kind: input, shape index: {}]
  %s4 = inlined_call_operand.hbm [shape: bf16[128,256], index: 4, kind: input, shape index: {}]
  %s5 = inlined_call_operand.vmem [shape: f32[1,256], index: 5, kind: input, shape index: {}]
  %s6 = inlined_call_operand.hbm [shape: bf16[128,128], index: 6, kind: input, shape index: {}]
  %s7 = inlined_call_operand.vmem [shape: f32[1,128], index: 7, kind: input, shape index: {}]
  %s8 = inlined_call_operand.hbm [shape: bf16[32,128], index: 8, kind: output, shape index: {0}]
  %s9 = inlined_call_operand.hbm [shape: f32[32,256], index: 9, kind: output, shape index: {1}]
  %10 = xla_tuple %s8, %s9
  %s11 = sld [smem:[#allocation0]]
  $region70: #{tpu_custom_call.1} parent=0
    _
  %s13 = ssub.s32 1, %s11
  %s14 = scalar_select 0, %s13, %s11
  $region1: #{tpu_custom_call.1} parent=0
    #allocation2 [shape = 'u8[8192]{0}', space=vmem, size = 0x2000, scoped, tag = 'input window, operand 0, single buffered']
    #allocation3 [shape = 's32[1]{0}', space=sflag, size = 0x4, scoped, tag = 'scoped memory for tpu_custom_call.1']
    #allocation4 [shape = 's32[1]{0}', space=sflag, size = 0x4, scoped, tag = 'scoped memory for tpu_custom_call.1']
    #allocation5 [shape = 'u8[8192]{0}', space=vmem, size = 0x2000, scoped, tag = 'input window, operand 1, single buffered']
    #allocation6 [shape = 's32[1]{0}', space=sflag, size = 0x4, scoped, tag = 'scoped memory for tpu_custom_call.1']
    #allocation7 [shape = 'u8[32768]{0}', space=vmem, size = 0x8000, scoped, tag = 'input window, operand 2, single buffered']
    #allocation8 [shape = 'u8[65536]{0}', space=vmem, size = 0x10000, scoped, tag = 'input window, operand 4, single buffered']
    #allocation9 [shape = 's32[1]{0}', space=sflag, size = 0x4, scoped, tag = 'scoped memory for tpu_custom_call.1']
    #allocation10 [shape = 'u8[32768]{0}', space=vmem, size = 0x8000, scoped, tag = 'input window, operand 6, single buffered']
    #allocation11 [shape = 'u8[8192]{0}', space=vmem, size = 0x2000, scoped, tag = 'output window, operand 0, single buffered']
    #allocation12 [shape = 'u8[32768]{0}', space=vmem, size = 0x8000, scoped, tag = 'output window, operand 1, single buffered']
    #allocation13 [shape = 's32[1]{0}', space=sflag, size = 0x4, scoped, tag = 'scoped memory for tpu_custom_call.1']
    %15 = vsyncpa [#allocation3], 0
    %16 = vsyncpa [#allocation6], 0
    %17 = vsyncpa [#allocation9], 0
    %18 = vsyncpa [#allocation4], 0
    %19 = vsyncpa [#allocation13], 0
    // Predicated region
    $region2: #{tpu_custom_call.1} parent=1 // pred_check
      _
    $region3: #{tpu_custom_call.1} parent=1 // pred_check_branch
      %21 = sbr.rel (0) target = $region5
    $region4: #{tpu_custom_call.1} parent=1 // pred_region
      %23 = vsyncadd [#allocation3], 0
      %s24 = sshll.u32 %s0, 4
      %s25 = int_to_ptr.hbm [resolvable:$true] %s24
      %s26 = sshll.u32 [#allocation2], 4
      %s27 = int_to_ptr.vmem [resolvable:$true] %s26
      %32 = dma.hbm_to_vmem [thread:$0]  %s25, 256, %s27, [#allocation3], 64, 64, 4
    $region5: #{tpu_custom_call.1} parent=1 // pred_fallthru
      _
    // Predicated region
    $region6: #{tpu_custom_call.1} parent=1 // pred_check
      _
    $region7: #{tpu_custom_call.1} parent=1 // pred_check_branch
      %34 = sbr.rel (0) target = $region9
    $region8: #{tpu_custom_call.1} parent=1 // pred_region
      %36 = vsyncadd [#allocation6], 0
      %s37 = sshll.u32 %s1, 4
      %s38 = int_to_ptr.hbm [resolvable:$true] %s37
      %s39 = sshll.u32 [#allocation5], 4
      %s40 = int_to_ptr.vmem [resolvable:$true] %s39
      %45 = dma.hbm_to_vmem [thread:$0]  %s38, 256, %s40, [#allocation6], 64, 64, 4
    $region9: #{tpu_custom_call.1} parent=1 // pred_fallthru
      _
    // Predicated region
    $region10: #{tpu_custom_call.1} parent=1 // pred_check
      _
    $region11: #{tpu_custom_call.1} parent=1 // pred_check_branch
      %47 = sbr.rel (0) target = $region13
    $region12: #{tpu_custom_call.1} parent=1 // pred_region
      %49 = vsyncadd [#allocation6], 0
      %s50 = sshll.u32 %s2, 4
      %s51 = int_to_ptr.hbm [resolvable:$true] %s50
      %s52 = sshll.u32 [#allocation7], 4
      %s53 = int_to_ptr.vmem [resolvable:$true] %s52
      %58 = dma.hbm_to_vmem [thread:$0]  %s51, 1024, %s53, [#allocation6], 64, 64, 4
    $region13: #{tpu_custom_call.1} parent=1 // pred_fallthru
      _
    // Predicated region
    $region14: #{tpu_custom_call.1} parent=1 // pred_check
      _
    $region15: #{tpu_custom_call.1} parent=1 // pred_check_branch
      %60 = sbr.rel (0) target = $region17
    $region16: #{tpu_custom_call.1} parent=1 // pred_region
      _
    $region17: #{tpu_custom_call.1} parent=1 // pred_fallthru
      _
    // Predicated region
    $region18: #{tpu_custom_call.1} parent=1 // pred_check
      _
    $region19: #{tpu_custom_call.1} parent=1 // pred_check_branch
      %62 = sbr.rel (0) target = $region21
    $region20: #{tpu_custom_call.1} parent=1 // pred_region
      %64 = vsyncadd [#allocation9], 0
      %s65 = sshll.u32 %s4, 4
      %s66 = int_to_ptr.hbm [resolvable:$true] %s65
      %s67 = sshll.u32 [#allocation8], 4
      %s68 = int_to_ptr.vmem [resolvable:$true] %s67
      %73 = dma.hbm_to_vmem [thread:$0]  %s66, 2048, %s68, [#allocation9], 128, 128, 8
    $region21: #{tpu_custom_call.1} parent=1 // pred_fallthru
      _
    // Predicated region
    $region22: #{tpu_custom_call.1} parent=1 // pred_check
      _
    $region23: #{tpu_custom_call.1} parent=1 // pred_check_branch
      %75 = sbr.rel (0) target = $region25
    $region24: #{tpu_custom_call.1} parent=1 // pred_region
      _
    $region25: #{tpu_custom_call.1} parent=1 // pred_fallthru
      _
    // Predicated region
    $region26: #{tpu_custom_call.1} parent=1 // pred_check
      _
    $region27: #{tpu_custom_call.1} parent=1 // pred_check_branch
      %77 = sbr.rel (0) target = $region29
    $region28: #{tpu_custom_call.1} parent=1 // pred_region
      %79 = vsyncadd [#allocation9], 0
      %s80 = sshll.u32 %s6, 4
      %s81 = int_to_ptr.hbm [resolvable:$true] %s80
      %s82 = sshll.u32 [#allocation10], 4
      %s83 = int_to_ptr.vmem [resolvable:$true] %s82
      %88 = dma.hbm_to_vmem [thread:$0]  %s81, 1024, %s83, [#allocation9], 64, 64, 4
    $region29: #{tpu_custom_call.1} parent=1 // pred_fallthru
      _
    // Predicated region
    $region30: #{tpu_custom_call.1} parent=1 // pred_check
      _
    $region31: #{tpu_custom_call.1} parent=1 // pred_check_branch
      %90 = sbr.rel (0) target = $region33
    $region32: #{tpu_custom_call.1} parent=1 // pred_region
      _
    $region33: #{tpu_custom_call.1} parent=1 // pred_fallthru
      _
    // Predicated region
    $region34: #{tpu_custom_call.1} parent=1 // pred_check
      _
    $region35: #{tpu_custom_call.1} parent=1 // pred_check_branch
      %92 = sbr.rel (0) target = $region37
    $region36: #{tpu_custom_call.1} parent=1 // pred_region
      %94 = dma.done [#allocation3], 256
    $region37: #{tpu_custom_call.1} parent=1 // pred_fallthru
      _
    // Predicated region
    $region38: #{tpu_custom_call.1} parent=1 // pred_check
      _
    $region39: #{tpu_custom_call.1} parent=1 // pred_check_branch
      %96 = sbr.rel (0) target = $region41
    $region40: #{tpu_custom_call.1} parent=1 // pred_region
      %98 = dma.done [#allocation6], 256
    $region41: #{tpu_custom_call.1} parent=1 // pred_fallthru
      _
    // Predicated region
    $region42: #{tpu_custom_call.1} parent=1 // pred_check
      _
    $region43: #{tpu_custom_call.1} parent=1 // pred_check_branch
      %100 = sbr.rel (0) target = $region45
    $region44: #{tpu_custom_call.1} parent=1 // pred_region
      %102 = dma.done [#allocation6], 1024
    $region45: #{tpu_custom_call.1} parent=1 // pred_fallthru
      _
    // Predicated region
    $region46: #{tpu_custom_call.1} parent=1 // pred_check
      _
    $region47: #{tpu_custom_call.1} parent=1 // pred_check_branch
      %104 = sbr.rel (0) target = $region49
    $region48: #{tpu_custom_call.1} parent=1 // pred_region
      %106 = dma.done [#allocation9], 2048
    $region49: #{tpu_custom_call.1} parent=1 // pred_fallthru
      _
    // Predicated region
    $region50: #{tpu_custom_call.1} parent=1 // pred_check
      _
    $region51: #{tpu_custom_call.1} parent=1 // pred_check_branch
      %108 = sbr.rel (0) target = $region53
    $region52: #{tpu_custom_call.1} parent=1 // pred_region
      %110 = dma.done [#allocation9], 1024
    $region53: #{tpu_custom_call.1} parent=1 // pred_fallthru
      _
    %v111 = vld [vmem:[#allocation2] sm:$0xf]
    %v112 = vld [vmem:[#allocation2 + $0x4] sm:$0xf]
    %v113 = vld [vmem:[#allocation2 + $0x8] sm:$0xf]
    %v114 = vld [vmem:[#allocation2 + $0xc] sm:$0xf]
    %v115 = vld [vmem:[#allocation7] sm:$0xf]
    %v116 = vld [vmem:[#allocation7 + $0x4] sm:$0xf]
    %v117 = vld [vmem:[#allocation7 + $0x8] sm:$0xf]
    %v118 = vld [vmem:[#allocation7 + $0xc] sm:$0xf]
    %v119 = vld [vmem:[#allocation7 + $0x10] sm:$0xf]
    %v120 = vld [vmem:[#allocation7 + $0x14] sm:$0xf]
    %v121 = vld [vmem:[#allocation7 + $0x18] sm:$0xf]
    %v122 = vld [vmem:[#allocation7 + $0x1c] sm:$0xf]
    %v123 = vld [vmem:[#allocation7 + $0x20] sm:$0xf]
    %v124 = vld [vmem:[#allocation7 + $0x24] sm:$0xf]
    %v125 = vld [vmem:[#allocation7 + $0x28] sm:$0xf]
    %v126 = vld [vmem:[#allocation7 + $0x2c] sm:$0xf]
    %v127 = vld [vmem:[#allocation7 + $0x30] sm:$0xf]
    %v128 = vld [vmem:[#allocation7 + $0x34] sm:$0xf]
    %v129 = vld [vmem:[#allocation7 + $0x38] sm:$0xf]
    %v130 = vld [vmem:[#allocation7 + $0x3c] sm:$0xf]
    %v131 = vld [vmem:[%s3] sm:$0x1]
    %v133 = vperm.slane %v131, 0
    %v139 = vunpack.c.l.b16 %v111
    %v140 = vunpack.c.l.b16 %v112
    %v141 = vunpack.c.l.b16 %v113
    %v142 = vunpack.c.l.b16 %v114
    %v143 = vpack.c.b16 %v140, %v139
    %v144 = vpack.c.b16 %v142, %v141
    %v163 = vunpack.c.l.b16 %v115
    %v164 = vunpack.c.l.b16 %v116
    %v165 = vunpack.c.l.b16 %v117
    %v166 = vunpack.c.l.b16 %v118
    %v167 = vunpack.c.l.b16 %v119
    %v168 = vunpack.c.l.b16 %v120
    %v169 = vunpack.c.l.b16 %v121
    %v170 = vunpack.c.l.b16 %v122
    %v171 = vunpack.c.l.b16 %v123
    %v172 = vunpack.c.l.b16 %v124
    %v173 = vunpack.c.l.b16 %v125
    %v174 = vunpack.c.l.b16 %v126
    %v175 = vunpack.c.l.b16 %v127
    %v176 = vunpack.c.l.b16 %v128
    %v177 = vunpack.c.l.b16 %v129
    %v178 = vunpack.c.l.b16 %v130
    %v179 = vpack.c.b16 %v164, %v163
    %v180 = vpack.c.b16 %v166, %v165
    %v181 = vpack.c.b16 %v168, %v167
    %v182 = vpack.c.b16 %v170, %v169
    %v183 = vpack.c.b16 %v172, %v171
    %v184 = vpack.c.b16 %v174, %v173
    %v185 = vpack.c.b16 %v176, %v175
    %v186 = vpack.c.b16 %v178, %v177
    %195 = vmatpush.bf16.msra.mxu0 %v186
    %196 = vmatpush.bf16.msra.mxu0 %v185
    %197 = vmatpush.bf16.msra.mxu0 %v184
    %198 = vmatpush.bf16.msra.mxu0 %v183
    %199 = vmatpush.bf16.msra.mxu0 %v182
    %200 = vmatpush.bf16.msra.mxu0 %v181
    %201 = vmatpush.bf16.msra.mxu0 %v180
    %202 = vmatpush.bf16.msra.mxu0 %v179
    %203 = vmatmul.bf16.gmra.mxu0 %v143
    %v204 = vpop.f32.mrf.mxu0
    %v205 = vadd.f32 %v133, %v204
    %v206 = vpop.f32.mrf.mxu0
    %v207 = vadd.f32 %v133, %v206
    %208 = vmatmul.bf16.gmra.mxu0 %v144
    %v209 = vpop.f32.mrf.mxu0
    %v210 = vadd.f32 %v133, %v209
    %v211 = vpop.f32.mrf.mxu0
    %v212 = vadd.f32 %v133, %v211
    %213 = vdwg.mxu0
    %v214 = vtanh.pop %v205
    %v215 = vtanh.pop %v207
    %v216 = vtanh.pop %v210
    %v217 = vtanh.pop %v212
    %v218 = vpack.c.bf16 %v215, %v214
    %v219 = vpack.c.bf16 %v217, %v216
    %v220 = vld [vmem:[#allocation8] sm:$0xff]
    %v221 = vld [vmem:[#allocation8 + $0x8] sm:$0xff]
    %v222 = vld [vmem:[#allocation8 + $0x10] sm:$0xff]
    %v223 = vld [vmem:[#allocation8 + $0x18] sm:$0xff]
    %v224 = vld [vmem:[#allocation8 + $0x20] sm:$0xff]
    %v225 = vld [vmem:[#allocation8 + $0x28] sm:$0xff]
    %v226 = vld [vmem:[#allocation8 + $0x30] sm:$0xff]
    %v227 = vld [vmem:[#allocation8 + $0x38] sm:$0xff]
    %v228 = vld [vmem:[#allocation8 + $0x40] sm:$0xff]
    %v229 = vld [vmem:[#allocation8 + $0x48] sm:$0xff]
    %v230 = vld [vmem:[#allocation8 + $0x50] sm:$0xff]
    %v231 = vld [vmem:[#allocation8 + $0x58] sm:$0xff]
    %v232 = vld [vmem:[#allocation8 + $0x60] sm:$0xff]
    %v233 = vld [vmem:[#allocation8 + $0x68] sm:$0xff]
    %v234 = vld [vmem:[#allocation8 + $0x70] sm:$0xff]
    %v235 = vld [vmem:[#allocation8 + $0x78] sm:$0xff]
    %v236 = vld [vmem:[%s5] sm:$0x3]
    %v238 = vperm.slane %v236, 0
    %v239 = vperm.slane %v236, 1
    %v258 = vunpack.c.l.b16 %v220
    %v259 = vunpack.c.h.b16 %v220
    %v260 = vunpack.c.l.b16 %v221
    %v261 = vunpack.c.h.b16 %v221
    %v262 = vunpack.c.l.b16 %v222
    %v263 = vunpack.c.h.b16 %v222
    %v264 = vunpack.c.l.b16 %v223
    %v265 = vunpack.c.h.b16 %v223
    %v266 = vunpack.c.l.b16 %v224
    %v267 = vunpack.c.h.b16 %v224
    %v268 = vunpack.c.l.b16 %v225
    %v269 = vunpack.c.h.b16 %v225
    %v270 = vunpack.c.l.b16 %v226
    %v271 = vunpack.c.h.b16 %v226
    %v272 = vunpack.c.l.b16 %v227
    %v273 = vunpack.c.h.b16 %v227
    %v274 = vunpack.c.l.b16 %v228
    %v275 = vunpack.c.h.b16 %v228
    %v276 = vunpack.c.l.b16 %v229
    %v277 = vunpack.c.h.b16 %v229
    %v278 = vunpack.c.l.b16 %v230
    %v279 = vunpack.c.h.b16 %v230
    %v280 = vunpack.c.l.b16 %v231
    %v281 = vunpack.c.h.b16 %v231
    %v282 = vunpack.c.l.b16 %v232
    %v283 = vunpack.c.h.b16 %v232
    %v284 = vunpack.c.l.b16 %v233
    %v285 = vunpack.c.h.b16 %v233
    %v286 = vunpack.c.l.b16 %v234
    %v287 = vunpack.c.h.b16 %v234
    %v288 = vunpack.c.l.b16 %v235
    %v289 = vunpack.c.h.b16 %v235
    %v290 = vpack.c.b16 %v260, %v258
    %v291 = vpack.c.b16 %v261, %v259
    %v292 = vpack.c.b16 %v264, %v262
    %v293 = vpack.c.b16 %v265, %v263
    %v294 = vpack.c.b16 %v268, %v266
    %v295 = vpack.c.b16 %v269, %v267
    %v296 = vpack.c.b16 %v272, %v270
    %v297 = vpack.c.b16 %v273, %v271
    %v298 = vpack.c.b16 %v276, %v274
    %v299 = vpack.c.b16 %v277, %v275
    %v300 = vpack.c.b16 %v280, %v278
    %v301 = vpack.c.b16 %v281, %v279
    %v302 = vpack.c.b16 %v284, %v282
    %v303 = vpack.c.b16 %v285, %v283
    %v304 = vpack.c.b16 %v288, %v286
    %v305 = vpack.c.b16 %v289, %v287
    %322 = vmatpush.bf16.msra.mxu0 %v304
    %323 = vmatpush.bf16.msra.mxu0 %v302
    %324 = vmatpush.bf16.msra.mxu0 %v300
    %325 = vmatpush.bf16.msra.mxu0 %v298
    %326 = vmatpush.bf16.msra.mxu0 %v296
    %327 = vmatpush.bf16.msra.mxu0 %v294
    %328 = vmatpush.bf16.msra.mxu0 %v292
    %329 = vmatpush.bf16.msra.mxu0 %v290
    %330 = vmatmul.bf16.gmra.mxu0 %v218
    %v331 = vpop.f32.mrf.mxu0
    %v332 = vadd.f32 %v238, %v331
    %v333 = vpop.f32.mrf.mxu0
    %v334 = vadd.f32 %v238, %v333
    %335 = vmatmul.bf16.gmra.mxu0 %v219
    %v336 = vpop.f32.mrf.mxu0
    %v337 = vadd.f32 %v238, %v336
    %v338 = vpop.f32.mrf.mxu0
    %v339 = vadd.f32 %v238, %v338
    %340 = vdwg.mxu0
    %341 = vmatpush.bf16.msra.mxu0 %v305
    %342 = vmatpush.bf16.msra.mxu0 %v303
    %343 = vmatpush.bf16.msra.mxu0 %v301
    %344 = vmatpush.bf16.msra.mxu0 %v299
    %345 = vmatpush.bf16.msra.mxu0 %v297
    %346 = vmatpush.bf16.msra.mxu0 %v295
    %347 = vmatpush.bf16.msra.mxu0 %v293
    %348 = vmatpush.bf16.msra.mxu0 %v291
    %349 = vmatmul.bf16.gmra.mxu0 %v218
    %v350 = vpop.f32.mrf.mxu0
    %v351 = vadd.f32 %v239, %v350
    %v352 = vpop.f32.mrf.mxu0
    %v353 = vadd.f32 %v239, %v352
    %354 = vmatmul.bf16.gmra.mxu0 %v219
    %v355 = vpop.f32.mrf.mxu0
    %v356 = vadd.f32 %v239, %v355
    %v357 = vpop.f32.mrf.mxu0
    %v358 = vadd.f32 %v239, %v357
    %359 = vdwg.mxu0
    %v360 = vmul.f32 %v351, 0.5
    %v361 = vmul.f32 %v353, 0.5
    %v362 = vmul.f32 %v356, 0.5
    %v363 = vmul.f32 %v358, 0.5
    %v364 = vmul.f32 %v360, 1.442695
    %v365 = vpow.pop %v364
    %v366 = vmul.f32 %v361, 1.442695
    %v367 = vpow.pop %v366
    %v368 = vmul.f32 %v362, 1.442695
    %v369 = vpow.pop %v368
    %v370 = vmul.f32 %v363, 1.442695
    %v371 = vpow.pop %v370
    %v372 = vld [vmem:[#allocation5] sm:$0xf]
    %v373 = vld [vmem:[#allocation5 + $0x4] sm:$0xf]
    %v374 = vld [vmem:[#allocation5 + $0x8] sm:$0xf]
    %v375 = vld [vmem:[#allocation5 + $0xc] sm:$0xf]
    %v376 = vunpack.c.l.bf16 %v372
    %v377 = vunpack.c.l.bf16 %v373
    %v378 = vunpack.c.l.bf16 %v374
    %v379 = vunpack.c.l.bf16 %v375
    %v380 = vmul.f32 %v365, %v376
    %v381 = vmul.f32 %v367, %v377
    %v382 = vmul.f32 %v369, %v378
    %v383 = vmul.f32 %v371, %v379
    %v384 = vadd.f32 %v332, %v380
    %v385 = vadd.f32 %v334, %v381
    %v386 = vadd.f32 %v337, %v382
    %v387 = vadd.f32 %v339, %v383
    %v388 = vpack.c.bf16 %v385, %v384
    %v389 = vpack.c.bf16 %v387, %v386
    %v390 = vld [vmem:[#allocation10] sm:$0xf]
    %v391 = vld [vmem:[#allocation10 + $0x4] sm:$0xf]
    %v392 = vld [vmem:[#allocation10 + $0x8] sm:$0xf]
    %v393 = vld [vmem:[#allocation10 + $0xc] sm:$0xf]
    %v394 = vld [vmem:[#allocation10 + $0x10] sm:$0xf]
    %v395 = vld [vmem:[#allocation10 + $0x14] sm:$0xf]
    %v396 = vld [vmem:[#allocation10 + $0x18] sm:$0xf]
    %v397 = vld [vmem:[#allocation10 + $0x1c] sm:$0xf]
    %v398 = vld [vmem:[#allocation10 + $0x20] sm:$0xf]
    %v399 = vld [vmem:[#allocation10 + $0x24] sm:$0xf]
    %v400 = vld [vmem:[#allocation10 + $0x28] sm:$0xf]
    %v401 = vld [vmem:[#allocation10 + $0x2c] sm:$0xf]
    %v402 = vld [vmem:[#allocation10 + $0x30] sm:$0xf]
    %v403 = vld [vmem:[#allocation10 + $0x34] sm:$0xf]
    %v404 = vld [vmem:[#allocation10 + $0x38] sm:$0xf]
    %v405 = vld [vmem:[#allocation10 + $0x3c] sm:$0xf]
    %v406 = vld [vmem:[%s7] sm:$0x1]
    %v408 = vperm.slane %v406, 0
    %v426 = vunpack.c.l.b16 %v390
    %v427 = vunpack.c.l.b16 %v391
    %v428 = vunpack.c.l.b16 %v392
    %v429 = vunpack.c.l.b16 %v393
    %v430 = vunpack.c.l.b16 %v394
    %v431 = vunpack.c.l.b16 %v395
    %v432 = vunpack.c.l.b16 %v396
    %v433 = vunpack.c.l.b16 %v397
    %v434 = vunpack.c.l.b16 %v398
    %v435 = vunpack.c.l.b16 %v399
    %v436 = vunpack.c.l.b16 %v400
    %v437 = vunpack.c.l.b16 %v401
    %v438 = vunpack.c.l.b16 %v402
    %v439 = vunpack.c.l.b16 %v403
    %v440 = vunpack.c.l.b16 %v404
    %v441 = vunpack.c.l.b16 %v405
    %v442 = vpack.c.b16 %v427, %v426
    %v443 = vpack.c.b16 %v429, %v428
    %v444 = vpack.c.b16 %v431, %v430
    %v445 = vpack.c.b16 %v433, %v432
    %v446 = vpack.c.b16 %v435, %v434
    %v447 = vpack.c.b16 %v437, %v436
    %v448 = vpack.c.b16 %v439, %v438
    %v449 = vpack.c.b16 %v441, %v440
    %458 = vmatpush.bf16.msra.mxu0 %v449
    %459 = vmatpush.bf16.msra.mxu0 %v448
    %460 = vmatpush.bf16.msra.mxu0 %v447
    %461 = vmatpush.bf16.msra.mxu0 %v446
    %462 = vmatpush.bf16.msra.mxu0 %v445
    %463 = vmatpush.bf16.msra.mxu0 %v444
    %464 = vmatpush.bf16.msra.mxu0 %v443
    %465 = vmatpush.bf16.msra.mxu0 %v442
    %466 = vmatmul.bf16.gmra.mxu0 %v388
    %v467 = vpop.f32.mrf.mxu0
    %v468 = vadd.f32 %v408, %v467
    %v469 = vpop.f32.mrf.mxu0
    %v470 = vadd.f32 %v408, %v469
    %471 = vmatmul.bf16.gmra.mxu0 %v389
    %v472 = vpop.f32.mrf.mxu0
    %v473 = vadd.f32 %v408, %v472
    %v474 = vpop.f32.mrf.mxu0
    %v475 = vadd.f32 %v408, %v474
    %476 = vdwg.mxu0
    %v477 = vmul.f32 %v468, 0.5
    %v478 = vmul.f32 %v470, 0.5
    %v479 = vmul.f32 %v473, 0.5
    %v480 = vmul.f32 %v475, 0.5
    %v481 = vtanh.pop %v477
    %v482 = vtanh.pop %v478
    %v483 = vtanh.pop %v479
    %v484 = vtanh.pop %v480
    %v485 = vadd.f32 %v481, 1.0
    %v486 = vadd.f32 %v482, 1.0
    %v487 = vadd.f32 %v483, 1.0
    %v488 = vadd.f32 %v484, 1.0
    %v489 = vmul.f32 %v485, 0.5
    %v490 = vmul.f32 %v486, 0.5
    %v491 = vmul.f32 %v487, 0.5
    %v492 = vmul.f32 %v488, 0.5
    %v493 = vpack.c.bf16 %v489, %v489
    %v494 = vpack.c.bf16 %v490, %v490
    %v495 = vpack.c.bf16 %v491, %v491
    %v496 = vpack.c.bf16 %v492, %v492
    %497 = vst [vmem:[#allocation11] sm:$0xf] %v493
    %498 = vst [vmem:[#allocation11 + $0x4] sm:$0xf] %v494
    %499 = vst [vmem:[#allocation11 + $0x8] sm:$0xf] %v495
    %500 = vst [vmem:[#allocation11 + $0xc] sm:$0xf] %v496
    %501 = vst [vmem:[#allocation12] sm:$0xff] %v332
    %502 = vst [vmem:[#allocation12 + $0x8] sm:$0xff] %v351
    %503 = vst [vmem:[#allocation12 + $0x10] sm:$0xff] %v334
    %504 = vst [vmem:[#allocation12 + $0x18] sm:$0xff] %v353
    %505 = vst [vmem:[#allocation12 + $0x20] sm:$0xff] %v337
    %506 = vst [vmem:[#allocation12 + $0x28] sm:$0xff] %v356
    %507 = vst [vmem:[#allocation12 + $0x30] sm:$0xff] %v339
    %508 = vst [vmem:[#allocation12 + $0x38] sm:$0xff] %v358
    // Predicated region
    $region54: #{tpu_custom_call.1} parent=1 // pred_check
      _
    $region55: #{tpu_custom_call.1} parent=1 // pred_check_branch
      %510 = sbr.rel (0) target = $region57
    $region56: #{tpu_custom_call.1} parent=1 // pred_region
      %512 = vsyncadd [#allocation4], 0
      %s513 = sshll.u32 [#allocation11], 4
      %s514 = int_to_ptr.vmem [resolvable:$true] %s513
      %s515 = sshll.u32 %s8, 4
      %s516 = int_to_ptr.hbm [resolvable:$true] %s515
      %521 = dma.vmem_to_hbm [thread:$0]  %s514, 256, %s516, [#allocation4], 64, 64, 4
    $region57: #{tpu_custom_call.1} parent=1 // pred_fallthru
      _
    // Predicated region
    $region58: #{tpu_custom_call.1} parent=1 // pred_check
      _
    $region59: #{tpu_custom_call.1} parent=1 // pred_check_branch
      %523 = sbr.rel (0) target = $region61
    $region60: #{tpu_custom_call.1} parent=1 // pred_region
      %525 = vsyncadd [#allocation13], 0
      %s526 = sshll.u32 [#allocation12], 4
      %s527 = int_to_ptr.vmem [resolvable:$true] %s526
      %s528 = sshll.u32 %s9, 4
      %s529 = int_to_ptr.hbm [resolvable:$true] %s528
      %534 = dma.vmem_to_hbm [thread:$0]  %s527, 1024, %s529, [#allocation13], 256, 256, 16
    $region61: #{tpu_custom_call.1} parent=1 // pred_fallthru
      _
    // Predicated region
    $region62: #{tpu_custom_call.1} parent=1 // pred_check
      _
    $region63: #{tpu_custom_call.1} parent=1 // pred_check_branch
      %536 = sbr.rel (0) target = $region65
    $region64: #{tpu_custom_call.1} parent=1 // pred_region
      %538 = dma.done [#allocation4], 256
    $region65: #{tpu_custom_call.1} parent=1 // pred_fallthru
      _
    // Predicated region
    $region66: #{tpu_custom_call.1} parent=1 // pred_check
      _
    $region67: #{tpu_custom_call.1} parent=1 // pred_check_branch
      %540 = sbr.rel (0) target = $region69
    $region68: #{tpu_custom_call.1} parent=1 // pred_region
      %542 = dma.done [#allocation13], 1024
    $region69: #{tpu_custom_call.1} parent=1 // pred_fallthru
      _
    %543 = vsyncpa [#allocation3], 1
    %544 = vsyncpa [#allocation6], 1
    %545 = vsyncpa [#allocation9], 1
    %546 = vsyncpa [#allocation4], 1
    %547 = vsyncpa [#allocation13], 1

</llo_original>
